<compile_context>
chip_gen: v7x
topology: tpu7x:2x2x1
jax: 0.10.0
libtpu: 0.0.40
codegen_flags: <defaults>
</compile_context>

<pallas_src>
import jax
import jax.numpy as jnp
import numpy as np
from jax import lax
from jax.experimental import pallas as pl
from jax.experimental.pallas import tpu as pltpu


def _round_up(x: int, m: int) -> int:
    return ((x + m - 1) // m) * m


def article_embedding_kernel(x_ref, ptab_ref, out_ref):
    # x_ref:    (TILE_T, 1)  int32  token ids (-1 = padding)
    # ptab_ref: (Vp, Hp)     bf16   projected table; row 0 is all zeros
    # out_ref:  (TILE_T, Hp) f32
    tile_t = x_ref.shape[0]
    vocab_p = ptab_ref.shape[0]

    idx = x_ref[...]                                               # (T, 1) int32
    iota = lax.broadcasted_iota(jnp.int32, (tile_t, vocab_p), 1)   # (T, Vp)
    # Pad tokens (idx == -1) map to row 0 which is all zeros, so the one-hot
    # needs no extra mask and the masked_fill comes for free.
    onehot = (iota == (idx + 1)).astype(ptab_ref.dtype)            # exact 0/1 bf16
    out_ref[...] = jnp.dot(
        onehot, ptab_ref[...], preferred_element_type=jnp.float32
    ).astype(out_ref.dtype)


def make_projected_table(table, w_t, b, *, table_dtype=jnp.bfloat16):
    """Init-time precompute (hoisted out of the per-forward path).

    table: (V+1, E) f32 with row 0 zeros; w_t: (E, H) f32 (PyTorch weight
    transposed); b: (1, H) f32.  Returns (padded (Vp, Hp) bf16 table, H).
    """
    V1, E = table.shape
    H = w_t.shape[1]
    ptab = jnp.dot(table, w_t, precision=lax.Precision.HIGHEST) + b   # (V+1, H)
    ptab = ptab.at[0].set(0.0)           # padding row: the bias must not leak
    Vp = _round_up(V1, 128)              # clean MXU contraction tiles
    Hp = _round_up(H, 128)               # lane-dense (unmasked) output stores
    ptab = jnp.pad(ptab, ((0, Vp - V1), (0, Hp - H))).astype(table_dtype)
    return ptab, H


def article_embedding(x, ptab, hidden_dim, *, tile_t=256, out_dtype=jnp.float32):
    """x: (B, L) int ids with -1 = padding; ptab: padded bf16 projected table."""
    B, L = x.shape
    Vp, Hp = ptab.shape
    H = hidden_dim

    # Collapse batch+sequence into token tiles; trailing pad tokens get id -1
    # (-> row 0 -> zero rows, sliced off below).
    T = B * L
    Tp = _round_up(T, tile_t)
    x_flat = jnp.pad(x.reshape(T).astype(jnp.int32), (0, Tp - T),
                     constant_values=-1).reshape(Tp, 1)

    grid = (Tp // tile_t,)

    out_bytes = jnp.dtype(out_dtype).itemsize
    ptab_bytes = Vp * Hp * jnp.dtype(ptab.dtype).itemsize
    vmem_estimate = (ptab_bytes                       # single-buffered table
                     + 2 * tile_t * Hp * out_bytes    # double-buffered output
                     + 2 * tile_t * 128 * 4)          # double-buffered ids (lane-padded)
    vmem_limit = int(min(max(2 * vmem_estimate + (4 << 20), 16 << 20), 64 << 20))

    cost = pl.CostEstimate(
        flops=2 * Tp * Vp * Hp,
        transcendentals=0,
        bytes_accessed=4 * Tp + ptab_bytes + Tp * Hp * out_bytes,
    )

    out = pl.pallas_call(
        article_embedding_kernel,
        out_shape=jax.ShapeDtypeStruct((Tp, Hp), out_dtype),
        grid=grid,
        in_specs=[
            pl.BlockSpec((tile_t, 1), lambda i: (i, 0)),          # token-id tile
            pl.BlockSpec((Vp, Hp), lambda i: (0, 0),              # resident table
                         pipeline_mode=pl.Buffered(1)),           # constant index_map
        ],
        out_specs=pl.BlockSpec((tile_t, Hp), lambda i: (i, 0)),   # lane-dense store
        compiler_params=pltpu.CompilerParams(
            dimension_semantics=("parallel",),
            vmem_limit_bytes=vmem_limit,
        ),
        cost_estimate=cost,
    )(x_flat, ptab)

    return out[:T, :H].reshape(B, L, H)


if __name__ == "__main__":
    # Small, deterministic synthetic setup (no checkpoint / parquet loading).
    B, L = 2, 8          # batch, sequence of article ids
    V = 16               # number of real articles in the pretrained table
    E = 128              # pretrained embedding dim
    H = 64               # hidden_dim of the projection (use_proj=True)

    key = jax.random.PRNGKey(0)
    k_vals, k_w, k_b, k_x = jax.random.split(key, 4)

    # Pretrained values, prepended with a zero row (padding_idx=0).
    values = jax.random.normal(k_vals, (V, E), dtype=jnp.float32)
    table = jnp.concatenate(
        [jnp.zeros((1, E), dtype=jnp.float32), values], axis=0)     # (V+1, E)

    # Linear(E, H): PyTorch weight is (H, E); pass transposed (E, H).
    w = jax.random.normal(k_w, (H, E), dtype=jnp.float32) * 0.02
    w_t = w.T                                                       # (E, H)
    b = jax.random.normal(k_b, (1, H), dtype=jnp.float32) * 0.02

    # Token ids in [-1, V-1]; -1 marks padding positions.
    x = jax.random.randint(k_x, (B, L), -1, V, dtype=jnp.int32)

    # Init-time precompute (runs once, not per forward).
    ptab, hidden_dim = make_projected_table(table, w_t, b)

    out = article_embedding(x, ptab, hidden_dim)
    out = jax.block_until_ready(out)

    # Reference 1: same bf16-rounded projected table -> kernel should match tightly
    # (one-hot row selection is exact on the MXU with f32 accumulation).
    ptab_rows = ptab[: V + 1, :H].astype(jnp.float32)               # row 0 zeros
    ref_bf16 = jnp.where((x == -1)[..., None], 0.0, ptab_rows[x + 1])

    # Reference 2: full-f32 PyTorch-semantics forward; only bf16 rounding of the
    # projected table separates the kernel from this (explicit ~1e-2 tolerance).
    h_ref = jnp.einsum("ble,eh->blh", table[x + 1], w_t,
                       precision=lax.Precision.HIGHEST) + b[0]
    h_ref = jnp.where((x == -1)[..., None], 0.0, h_ref)

    out_np = np.asarray(out)
    if not np.allclose(out_np, np.asarray(ref_bf16), atol=1e-5, rtol=1e-5):
        raise AssertionError("Pallas kernel mismatch vs bf16-table reference")
    if not np.allclose(out_np, np.asarray(h_ref), atol=1e-2, rtol=1e-2):
        raise AssertionError("Pallas kernel mismatch vs f32 PyTorch reference")

    print("KERNEL_OK")
</pallas_src>

<mosaic_0001>
module attributes {stable_mosaic.version = 11 : i64} {
  func.func @article_embedding_kernel(%arg0: i32, %arg1: memref<256x1xi32, #tpu.memory_space<vmem>>, %arg2: memref<128x128xbf16, #tpu.memory_space<vmem>>, %arg3: memref<256x128xf32, #tpu.memory_space<vmem>>) attributes {dimension_semantics = [#tpu.dimension_semantics<parallel>], iteration_bounds = array<i64: 1>, scalar_prefetch = 0 : i64, scratch_operands = 0 : i64, tpu.core_type = #tpu.core_type<tc>, window_params = [{transform_indices = @transform_0, window_bounds = array<i64: 256, 1>}, {pipeline_mode = #tpu.pipeline_mode<synchronous>, transform_indices = @transform_1, window_bounds = array<i64: 128, 128>}, {transform_indices = @transform_2, window_bounds = array<i64: 256, 128>}]} {
    %c0 = arith.constant 0 : index
    %c0_0 = arith.constant 0 : index
    %0 = vector.load %arg1[%c0, %c0_0] : memref<256x1xi32, #tpu.memory_space<vmem>>, vector<256x1xi32>
    %1 = tpu.iota {dimensions = array<i32: 1>} : vector<256x128xi32>
    %c1_i32 = arith.constant 1 : i32
    %2 = vector.broadcast %c1_i32 : i32 to vector<256x1xi32>
    %3 = arith.addi %0, %2 : vector<256x1xi32>
    %4 = vector.broadcast %3 : vector<256x1xi32> to vector<256x128xi32>
    %5 = arith.cmpi eq, %1, %4 : vector<256x128xi32>
    %6 = arith.extui %5 : vector<256x128xi1> to vector<256x128xi32>
    %7 = arith.sitofp %6 : vector<256x128xi32> to vector<256x128xf32>
    %8 = arith.truncf %7 : vector<256x128xf32> to vector<256x128xbf16>
    %c0_1 = arith.constant 0 : index
    %c0_2 = arith.constant 0 : index
    %9 = vector.load %arg2[%c0_1, %c0_2] : memref<128x128xbf16, #tpu.memory_space<vmem>>, vector<128x128xbf16>
    %cst = arith.constant dense<0.000000e+00> : vector<256x128xf32>
    %10 = tpu.matmul %8, %9, %cst {dimension_numbers = #tpu.dot_dimension_numbers<[1], [0], [0], [1], [0, 0, 1, 1], [], []>} : vector<256x128xbf16>, vector<128x128xbf16>, vector<256x128xf32> -> vector<256x128xf32>
    %c0_3 = arith.constant 0 : index
    %c0_4 = arith.constant 0 : index
    %11 = vector.load %arg3[%c0_3, %c0_4] : memref<256x128xf32, #tpu.memory_space<vmem>>, vector<256x128xf32>
    tpu.vector_store %arg3[%c0_3, %c0_4], %10 {strides = array<i32>} : memref<256x128xf32, #tpu.memory_space<vmem>>, vector<256x128xf32>,
    return
  }
  func.func @transform_0(%arg0: i32) -> (i32, i32) {
    %c0_i32 = arith.constant 0 : i32
    %c0_i32_0 = arith.constant 0 : i32
    return %arg0, %c0_i32 : i32, i32
  }
  func.func @transform_1(%arg0: i32) -> (i32, i32) {
    %c0_i32 = arith.constant 0 : i32
    %c0_i32_0 = arith.constant 0 : i32
    %c0_i32_1 = arith.constant 0 : i32
    return %c0_i32, %c0_i32_0 : i32, i32
  }
  func.func @transform_2(%arg0: i32) -> (i32, i32) {
    %c0_i32 = arith.constant 0 : i32
    %c0_i32_0 = arith.constant 0 : i32
    return %arg0, %c0_i32 : i32, i32
  }
}

</mosaic_0001>

<llo_original>
// kernel: tpu_custom_call.1
$region0: #{tpu_custom_call.1}
  #allocation0 [shape = 'u32[]', space=smem, size = 0x4, offset = 0x4, fixed_abs, tag = 'smem constant byte address 0x4 - core index']
  #allocation1 [shape = 'u32[144,128]{1,0:T(1,128)}', space=vmem, size = 0x12000, scoped, tag = 'internal scratch']
  %s0 = inlined_call_operand.vmem [shape: s32[256,1], index: 0, kind: input, shape index: {}]
  %s1 = inlined_call_operand.vmem [shape: bf16[128,128], index: 1, kind: input, shape index: {}]
  %s2 = inlined_call_operand.hbm [shape: f32[256,128], index: 2, kind: output, shape index: {}]
  %s3 = sld [smem:[#allocation0]]
  $region18: #{tpu_custom_call.1} parent=0
    _
  %s5 = ssub.s32 1, %s3
  %s6 = scalar_select 0, %s5, %s3
  $region1: #{tpu_custom_call.1} parent=0
    #allocation2 [shape = 'u8[131072]{0}', space=vmem, size = 0x20000, scoped, tag = 'output window, operand 0, single buffered']
    #allocation3 [shape = 's32[1]{0}', space=sflag, size = 0x4, scoped, tag = 'scoped memory for tpu_custom_call.1']
    %7 = vsyncpa [#allocation3], 0
    // Predicated region
    $region2: #{tpu_custom_call.1} parent=1 // pred_check
      _
    $region3: #{tpu_custom_call.1} parent=1 // pred_check_branch
      %9 = sbr.rel (0) target = $region5
    $region4: #{tpu_custom_call.1} parent=1 // pred_region
      _
    $region5: #{tpu_custom_call.1} parent=1 // pred_fallthru
      _
    // Predicated region
    $region6: #{tpu_custom_call.1} parent=1 // pred_check
      _
    $region7: #{tpu_custom_call.1} parent=1 // pred_check_branch
      %11 = sbr.rel (0) target = $region9
    $region8: #{tpu_custom_call.1} parent=1 // pred_region
      _
    $region9: #{tpu_custom_call.1} parent=1 // pred_fallthru
      _
    %v13 = vld [vmem:[%s0] sm:$0xff]
    %v14 = vld [vmem:[%s0 + $0x8] sm:$0xff]
    %v15 = vld [vmem:[%s0 + $0x10] sm:$0xff]
    %v16 = vld [vmem:[%s0 + $0x18] sm:$0xff]
    %v17 = vld [vmem:[%s0 + $0x20] sm:$0xff]
    %v18 = vld [vmem:[%s0 + $0x28] sm:$0xff]
    %v19 = vld [vmem:[%s0 + $0x30] sm:$0xff]
    %v20 = vld [vmem:[%s0 + $0x38] sm:$0xff]
    %v21 = vld [vmem:[%s0 + $0x40] sm:$0xff]
    %v22 = vld [vmem:[%s0 + $0x48] sm:$0xff]
    %v23 = vld [vmem:[%s0 + $0x50] sm:$0xff]
    %v24 = vld [vmem:[%s0 + $0x58] sm:$0xff]
    %v25 = vld [vmem:[%s0 + $0x60] sm:$0xff]
    %v26 = vld [vmem:[%s0 + $0x68] sm:$0xff]
    %v27 = vld [vmem:[%s0 + $0x70] sm:$0xff]
    %v28 = vld [vmem:[%s0 + $0x78] sm:$0xff]
    %v29 = vld [vmem:[%s0 + $0x80] sm:$0xff]
    %v30 = vld [vmem:[%s0 + $0x88] sm:$0xff]
    %v31 = vld [vmem:[%s0 + $0x90] sm:$0xff]
    %v32 = vld [vmem:[%s0 + $0x98] sm:$0xff]
    %v33 = vld [vmem:[%s0 + $0xa0] sm:$0xff]
    %v34 = vld [vmem:[%s0 + $0xa8] sm:$0xff]
    %v35 = vld [vmem:[%s0 + $0xb0] sm:$0xff]
    %v36 = vld [vmem:[%s0 + $0xb8] sm:$0xff]
    %v37 = vld [vmem:[%s0 + $0xc0] sm:$0xff]
    %v38 = vld [vmem:[%s0 + $0xc8] sm:$0xff]
    %v39 = vld [vmem:[%s0 + $0xd0] sm:$0xff]
    %v40 = vld [vmem:[%s0 + $0xd8] sm:$0xff]
    %v41 = vld [vmem:[%s0 + $0xe0] sm:$0xff]
    %v42 = vld [vmem:[%s0 + $0xe8] sm:$0xff]
    %v43 = vld [vmem:[%s0 + $0xf0] sm:$0xff]
    %v44 = vld [vmem:[%s0 + $0xf8] sm:$0xff]
    %v45 = vlaneseq
    %v46 = vand.u32 %v45, 127
    %v47 = vadd.s32 %v13, 1
    %v48 = vadd.s32 %v14, 1
    %v49 = vadd.s32 %v15, 1
    %v50 = vadd.s32 %v16, 1
    %v51 = vadd.s32 %v17, 1
    %v52 = vadd.s32 %v18, 1
    %v53 = vadd.s32 %v19, 1
    %v54 = vadd.s32 %v20, 1
    %v55 = vadd.s32 %v21, 1
    %v56 = vadd.s32 %v22, 1
    %v57 = vadd.s32 %v23, 1
    %v58 = vadd.s32 %v24, 1
    %v59 = vadd.s32 %v25, 1
    %v60 = vadd.s32 %v26, 1
    %v61 = vadd.s32 %v27, 1
    %v62 = vadd.s32 %v28, 1
    %v63 = vadd.s32 %v29, 1
    %v64 = vadd.s32 %v30, 1
    %v65 = vadd.s32 %v31, 1
    %v66 = vadd.s32 %v32, 1
    %v67 = vadd.s32 %v33, 1
    %v68 = vadd.s32 %v34, 1
    %v69 = vadd.s32 %v35, 1
    %v70 = vadd.s32 %v36, 1
    %v71 = vadd.s32 %v37, 1
    %v72 = vadd.s32 %v38, 1
    %v73 = vadd.s32 %v39, 1
    %v74 = vadd.s32 %v40, 1
    %v75 = vadd.s32 %v41, 1
    %v76 = vadd.s32 %v42, 1
    %v77 = vadd.s32 %v43, 1
    %v78 = vadd.s32 %v44, 1
    %79 = vset.pattern.permute.xlu0 0
    %80 = vperm.xlu0 %79, %v47
    %v81 = vpop.permute.xlu0 %80
    %82 = vset.pattern.permute.xlu0 0
    %83 = vperm.xlu0 %82, %v48
    %v84 = vpop.permute.xlu0 %83
    %85 = vset.pattern.permute.xlu0 0
    %86 = vperm.xlu0 %85, %v49
    %v87 = vpop.permute.xlu0 %86
    %88 = vset.pattern.permute.xlu0 0
    %89 = vperm.xlu0 %88, %v50
    %v90 = vpop.permute.xlu0 %89
    %91 = vset.pattern.permute.xlu0 0
    %92 = vperm.xlu0 %91, %v51
    %v93 = vpop.permute.xlu0 %92
    %94 = vset.pattern.permute.xlu0 0
    %95 = vperm.xlu0 %94, %v52
    %v96 = vpop.permute.xlu0 %95
    %97 = vset.pattern.permute.xlu0 0
    %98 = vperm.xlu0 %97, %v53
    %v99 = vpop.permute.xlu0 %98
    %100 = vset.pattern.permute.xlu0 0
    %101 = vperm.xlu0 %100, %v54
    %v102 = vpop.permute.xlu0 %101
    %103 = vset.pattern.permute.xlu0 0
    %104 = vperm.xlu0 %103, %v55
    %v105 = vpop.permute.xlu0 %104
    %106 = vset.pattern.permute.xlu0 0
    %107 = vperm.xlu0 %106, %v56
    %v108 = vpop.permute.xlu0 %107
    %109 = vset.pattern.permute.xlu0 0
    %110 = vperm.xlu0 %109, %v57
    %v111 = vpop.permute.xlu0 %110
    %112 = vset.pattern.permute.xlu0 0
    %113 = vperm.xlu0 %112, %v58
    %v114 = vpop.permute.xlu0 %113
    %115 = vset.pattern.permute.xlu0 0
    %116 = vperm.xlu0 %115, %v59
    %v117 = vpop.permute.xlu0 %116
    %118 = vset.pattern.permute.xlu0 0
    %119 = vperm.xlu0 %118, %v60
    %v120 = vpop.permute.xlu0 %119
    %121 = vset.pattern.permute.xlu0 0
    %122 = vperm.xlu0 %121, %v61
    %v123 = vpop.permute.xlu0 %122
    %124 = vset.pattern.permute.xlu0 0
    %125 = vperm.xlu0 %124, %v62
    %v126 = vpop.permute.xlu0 %125
    %127 = vset.pattern.permute.xlu0 0
    %128 = vperm.xlu0 %127, %v63
    %v129 = vpop.permute.xlu0 %128
    %130 = vset.pattern.permute.xlu0 0
    %131 = vperm.xlu0 %130, %v64
    %v132 = vpop.permute.xlu0 %131
    %133 = vset.pattern.permute.xlu0 0
    %134 = vperm.xlu0 %133, %v65
    %v135 = vpop.permute.xlu0 %134
    %136 = vset.pattern.permute.xlu0 0
    %137 = vperm.xlu0 %136, %v66
    %v138 = vpop.permute.xlu0 %137
    %139 = vset.pattern.permute.xlu0 0
    %140 = vperm.xlu0 %139, %v67
    %v141 = vpop.permute.xlu0 %140
    %142 = vset.pattern.permute.xlu0 0
    %143 = vperm.xlu0 %142, %v68
    %v144 = vpop.permute.xlu0 %143
    %145 = vset.pattern.permute.xlu0 0
    %146 = vperm.xlu0 %145, %v69
    %v147 = vpop.permute.xlu0 %146
    %148 = vset.pattern.permute.xlu0 0
    %149 = vperm.xlu0 %148, %v70
    %v150 = vpop.permute.xlu0 %149
    %151 = vset.pattern.permute.xlu0 0
    %152 = vperm.xlu0 %151, %v71
    %v153 = vpop.permute.xlu0 %152
    %154 = vset.pattern.permute.xlu0 0
    %155 = vperm.xlu0 %154, %v72
    %v156 = vpop.permute.xlu0 %155
    %157 = vset.pattern.permute.xlu0 0
    %158 = vperm.xlu0 %157, %v73
    %v159 = vpop.permute.xlu0 %158
    %160 = vset.pattern.permute.xlu0 0
    %161 = vperm.xlu0 %160, %v74
    %v162 = vpop.permute.xlu0 %161
    %163 = vset.pattern.permute.xlu0 0
    %164 = vperm.xlu0 %163, %v75
    %v165 = vpop.permute.xlu0 %164
    %166 = vset.pattern.permute.xlu0 0
    %167 = vperm.xlu0 %166, %v76
    %v168 = vpop.permute.xlu0 %167
    %169 = vset.pattern.permute.xlu0 0
    %170 = vperm.xlu0 %169, %v77
    %v171 = vpop.permute.xlu0 %170
    %172 = vset.pattern.permute.xlu0 0
    %173 = vperm.xlu0 %172, %v78
    %v174 = vpop.permute.xlu0 %173
    %vm175 = vcmp.eq.s32.totalorder %v46, %v81
    %vm176 = vcmp.eq.s32.totalorder %v46, %v84
    %vm177 = vcmp.eq.s32.totalorder %v46, %v87
    %vm178 = vcmp.eq.s32.totalorder %v46, %v90
    %vm179 = vcmp.eq.s32.totalorder %v46, %v93
    %vm180 = vcmp.eq.s32.totalorder %v46, %v96
    %vm181 = vcmp.eq.s32.totalorder %v46, %v99
    %vm182 = vcmp.eq.s32.totalorder %v46, %v102
    %vm183 = vcmp.eq.s32.totalorder %v46, %v105
    %vm184 = vcmp.eq.s32.totalorder %v46, %v108
    %vm185 = vcmp.eq.s32.totalorder %v46, %v111
    %vm186 = vcmp.eq.s32.totalorder %v46, %v114
    %vm187 = vcmp.eq.s32.totalorder %v46, %v117
    %vm188 = vcmp.eq.s32.totalorder %v46, %v120
    %vm189 = vcmp.eq.s32.totalorder %v46, %v123
    %vm190 = vcmp.eq.s32.totalorder %v46, %v126
    %vm191 = vcmp.eq.s32.totalorder %v46, %v129
    %vm192 = vcmp.eq.s32.totalorder %v46, %v132
    %vm193 = vcmp.eq.s32.totalorder %v46, %v135
    %vm194 = vcmp.eq.s32.totalorder %v46, %v138
    %vm195 = vcmp.eq.s32.totalorder %v46, %v141
    %vm196 = vcmp.eq.s32.totalorder %v46, %v144
    %vm197 = vcmp.eq.s32.totalorder %v46, %v147
    %vm198 = vcmp.eq.s32.totalorder %v46, %v150
    %vm199 = vcmp.eq.s32.totalorder %v46, %v153
    %vm200 = vcmp.eq.s32.totalorder %v46, %v156
    %vm201 = vcmp.eq.s32.totalorder %v46, %v159
    %vm202 = vcmp.eq.s32.totalorder %v46, %v162
    %vm203 = vcmp.eq.s32.totalorder %v46, %v165
    %vm204 = vcmp.eq.s32.totalorder %v46, %v168
    %vm205 = vcmp.eq.s32.totalorder %v46, %v171
    %vm206 = vcmp.eq.s32.totalorder %v46, %v174
    %v207 = vsel %vm175, 1, 0
    %v208 = vsel %vm176, 1, 0
    %v209 = vsel %vm177, 1, 0
    %v210 = vsel %vm178, 1, 0
    %v211 = vsel %vm179, 1, 0
    %v212 = vsel %vm180, 1, 0
    %v213 = vsel %vm181, 1, 0
    %v214 = vsel %vm182, 1, 0
    %v215 = vsel %vm183, 1, 0
    %v216 = vsel %vm184, 1, 0
    %v217 = vsel %vm185, 1, 0
    %v218 = vsel %vm186, 1, 0
    %v219 = vsel %vm187, 1, 0
    %v220 = vsel %vm188, 1, 0
    %v221 = vsel %vm189, 1, 0
    %v222 = vsel %vm190, 1, 0
    %v223 = vsel %vm191, 1, 0
    %v224 = vsel %vm192, 1, 0
    %v225 = vsel %vm193, 1, 0
    %v226 = vsel %vm194, 1, 0
    %v227 = vsel %vm195, 1, 0
    %v228 = vsel %vm196, 1, 0
    %v229 = vsel %vm197, 1, 0
    %v230 = vsel %vm198, 1, 0
    %v231 = vsel %vm199, 1, 0
    %v232 = vsel %vm200, 1, 0
    %v233 = vsel %vm201, 1, 0
    %v234 = vsel %vm202, 1, 0
    %v235 = vsel %vm203, 1, 0
    %v236 = vsel %vm204, 1, 0
    %v237 = vsel %vm205, 1, 0
    %v238 = vsel %vm206, 1, 0
    %v239 = vcvt.s32.f32 %v207
    %v240 = vcvt.s32.f32 %v208
    %v241 = vcvt.s32.f32 %v209
    %v242 = vcvt.s32.f32 %v210
    %v243 = vcvt.s32.f32 %v211
    %v244 = vcvt.s32.f32 %v212
    %v245 = vcvt.s32.f32 %v213
    %v246 = vcvt.s32.f32 %v214
    %v247 = vcvt.s32.f32 %v215
    %v248 = vcvt.s32.f32 %v216
    %v249 = vcvt.s32.f32 %v217
    %v250 = vcvt.s32.f32 %v218
    %v251 = vcvt.s32.f32 %v219
    %v252 = vcvt.s32.f32 %v220
    %v253 = vcvt.s32.f32 %v221
    %v254 = vcvt.s32.f32 %v222
    %v255 = vcvt.s32.f32 %v223
    %v256 = vcvt.s32.f32 %v224
    %v257 = vcvt.s32.f32 %v225
    %v258 = vcvt.s32.f32 %v226
    %v259 = vcvt.s32.f32 %v227
    %v260 = vcvt.s32.f32 %v228
    %v261 = vcvt.s32.f32 %v229
    %v262 = vcvt.s32.f32 %v230
    %v263 = vcvt.s32.f32 %v231
    %v264 = vcvt.s32.f32 %v232
    %v265 = vcvt.s32.f32 %v233
    %v266 = vcvt.s32.f32 %v234
    %v267 = vcvt.s32.f32 %v235
    %v268 = vcvt.s32.f32 %v236
    %v269 = vcvt.s32.f32 %v237
    %v270 = vcvt.s32.f32 %v238
    %v271 = vpack.c.bf16 %v240, %v239
    %v272 = vpack.c.bf16 %v242, %v241
    %v273 = vpack.c.bf16 %v244, %v243
    %v274 = vpack.c.bf16 %v246, %v245
    %v275 = vpack.c.bf16 %v248, %v247
    %v276 = vpack.c.bf16 %v250, %v249
    %v277 = vpack.c.bf16 %v252, %v251
    %v278 = vpack.c.bf16 %v254, %v253
    %v279 = vpack.c.bf16 %v256, %v255
    %v280 = vpack.c.bf16 %v258, %v257
    %v281 = vpack.c.bf16 %v260, %v259
    %v282 = vpack.c.bf16 %v262, %v261
    %v283 = vpack.c.bf16 %v264, %v263
    %v284 = vpack.c.bf16 %v266, %v265
    %v285 = vpack.c.bf16 %v268, %v267
    %v286 = vpack.c.bf16 %v270, %v269
    %v287 = vld [vmem:[%s1] sm:$0xf]
    %v288 = vld [vmem:[%s1 + $0x4] sm:$0xf]
    %v289 = vld [vmem:[%s1 + $0x8] sm:$0xf]
    %v290 = vld [vmem:[%s1 + $0xc] sm:$0xf]
    %v291 = vld [vmem:[%s1 + $0x10] sm:$0xf]
    %v292 = vld [vmem:[%s1 + $0x14] sm:$0xf]
    %v293 = vld [vmem:[%s1 + $0x18] sm:$0xf]
    %v294 = vld [vmem:[%s1 + $0x1c] sm:$0xf]
    %v295 = vld [vmem:[%s1 + $0x20] sm:$0xf]
    %v296 = vld [vmem:[%s1 + $0x24] sm:$0xf]
    %v297 = vld [vmem:[%s1 + $0x28] sm:$0xf]
    %v298 = vld [vmem:[%s1 + $0x2c] sm:$0xf]
    %v299 = vld [vmem:[%s1 + $0x30] sm:$0xf]
    %v300 = vld [vmem:[%s1 + $0x34] sm:$0xf]
    %v301 = vld [vmem:[%s1 + $0x38] sm:$0xf]
    %v302 = vld [vmem:[%s1 + $0x3c] sm:$0xf]
    %v319 = vunpack.c.l.b16 %v287
    %v320 = vunpack.c.l.b16 %v288
    %v321 = vunpack.c.l.b16 %v289
    %v322 = vunpack.c.l.b16 %v290
    %v323 = vunpack.c.l.b16 %v291
    %v324 = vunpack.c.l.b16 %v292
    %v325 = vunpack.c.l.b16 %v293
    %v326 = vunpack.c.l.b16 %v294
    %v327 = vunpack.c.l.b16 %v295
    %v328 = vunpack.c.l.b16 %v296
    %v329 = vunpack.c.l.b16 %v297
    %v330 = vunpack.c.l.b16 %v298
    %v331 = vunpack.c.l.b16 %v299
    %v332 = vunpack.c.l.b16 %v300
    %v333 = vunpack.c.l.b16 %v301
    %v334 = vunpack.c.l.b16 %v302
    %v335 = vpack.c.b16 %v320, %v319
    %v336 = vpack.c.b16 %v322, %v321
    %v337 = vpack.c.b16 %v324, %v323
    %v338 = vpack.c.b16 %v326, %v325
    %v339 = vpack.c.b16 %v328, %v327
    %v340 = vpack.c.b16 %v330, %v329
    %v341 = vpack.c.b16 %v332, %v331
    %v342 = vpack.c.b16 %v334, %v333
    %351 = vmatprep.subr.bf16.mxu0 0
    %352 = vmatpush1.bf16.msra.mxu0 %v335
    %353 = vmatprep.subr.bf16.mxu0 0
    %354 = vmatpush1.bf16.msra.mxu0 %v336
    %355 = vmatprep.subr.bf16.mxu0 0
    %356 = vmatpush1.bf16.msra.mxu0 %v337
    %357 = vmatprep.subr.bf16.mxu0 0
    %358 = vmatpush1.bf16.msra.mxu0 %v338
    %359 = vmatprep.subr.bf16.mxu0 0
    %360 = vmatpush1.bf16.msra.mxu0 %v339
    %361 = vmatprep.subr.bf16.mxu0 0
    %362 = vmatpush1.bf16.msra.mxu0 %v340
    %363 = vmatprep.subr.bf16.mxu0 0
    %364 = vmatpush1.bf16.msra.mxu0 %v341
    %365 = vmatprep.subr.bf16.mxu0 0
    %366 = vmatpush1.bf16.msra.mxu0 %v342
    %367 = vmatprep.subr.bf16.mxu0 0
    %368 = vmatpush1.bf16.msra.mxu0 0
    %369 = vmatprep.subr.bf16.mxu0 0
    %370 = vmatpush1.bf16.msra.mxu0 0
    %371 = vmatprep.subr.bf16.mxu0 0
    %372 = vmatpush1.bf16.msra.mxu0 0
    %373 = vmatprep.subr.bf16.mxu0 0
    %374 = vmatpush1.bf16.msra.mxu0 0
    %375 = vmatprep.subr.bf16.mxu0 0
    %376 = vmatpush1.bf16.msra.mxu0 0
    %377 = vmatprep.subr.bf16.mxu0 0
    %378 = vmatpush1.bf16.msra.mxu0 0
    %379 = vmatprep.subr.bf16.mxu0 0
    %380 = vmatpush1.bf16.msra.mxu0 0
    %381 = vmatprep.subr.bf16.mxu0 0
    %382 = vmatpush1.bf16.msra.mxu0 0
    %383 = vmatprep.mubr.bf16.mxu0 0
    %384 = vmatmul.mubr.bf16.gmra.mrb[0].mxu0 %v271
    %v385 = vpop.f32.mrb[0].mxu0
    %v386 = vadd.f32 0.0, %v385
    %v387 = vpop.f32.mrb[0].mxu0
    %v388 = vpop.f32.mrb[0].mxu0
    %v389 = vadd.f32 0.0, %v388
    %v390 = vpop.f32.mrb[0].mxu0
    %391 = vmatprep.mubr.bf16.mxu0 0
    %392 = vmatmul.mubr.bf16.gmra.mrb[0].mxu0 %v272
    %v393 = vpop.f32.mrb[0].mxu0
    %v394 = vadd.f32 0.0, %v393
    %v395 = vpop.f32.mrb[0].mxu0
    %v396 = vpop.f32.mrb[0].mxu0
    %v397 = vadd.f32 0.0, %v396
    %v398 = vpop.f32.mrb[0].mxu0
    %399 = vmatprep.mubr.bf16.mxu0 0
    %400 = vmatmul.mubr.bf16.gmra.mrb[0].mxu0 %v273
    %v401 = vpop.f32.mrb[0].mxu0
    %v402 = vadd.f32 0.0, %v401
    %v403 = vpop.f32.mrb[0].mxu0
    %v404 = vpop.f32.mrb[0].mxu0
    %v405 = vadd.f32 0.0, %v404
    %v406 = vpop.f32.mrb[0].mxu0
    %407 = vmatprep.mubr.bf16.mxu0 0
    %408 = vmatmul.mubr.bf16.gmra.mrb[0].mxu0 %v274
    %v409 = vpop.f32.mrb[0].mxu0
    %v410 = vadd.f32 0.0, %v409
    %v411 = vpop.f32.mrb[0].mxu0
    %v412 = vpop.f32.mrb[0].mxu0
    %v413 = vadd.f32 0.0, %v412
    %v414 = vpop.f32.mrb[0].mxu0
    %415 = vmatprep.mubr.bf16.mxu0 0
    %416 = vmatmul.mubr.bf16.gmra.mrb[0].mxu0 %v275
    %v417 = vpop.f32.mrb[0].mxu0
    %v418 = vadd.f32 0.0, %v417
    %v419 = vpop.f32.mrb[0].mxu0
    %v420 = vpop.f32.mrb[0].mxu0
    %v421 = vadd.f32 0.0, %v420
    %v422 = vpop.f32.mrb[0].mxu0
    %423 = vmatprep.mubr.bf16.mxu0 0
    %424 = vmatmul.mubr.bf16.gmra.mrb[0].mxu0 %v276
    %v425 = vpop.f32.mrb[0].mxu0
    %v426 = vadd.f32 0.0, %v425
    %v427 = vpop.f32.mrb[0].mxu0
    %v428 = vpop.f32.mrb[0].mxu0
    %v429 = vadd.f32 0.0, %v428
    %v430 = vpop.f32.mrb[0].mxu0
    %431 = vmatprep.mubr.bf16.mxu0 0
    %432 = vmatmul.mubr.bf16.gmra.mrb[0].mxu0 %v277
    %v433 = vpop.f32.mrb[0].mxu0
    %v434 = vadd.f32 0.0, %v433
    %v435 = vpop.f32.mrb[0].mxu0
    %v436 = vpop.f32.mrb[0].mxu0
    %v437 = vadd.f32 0.0, %v436
    %v438 = vpop.f32.mrb[0].mxu0
    %439 = vmatprep.mubr.bf16.mxu0 0
    %440 = vmatmul.mubr.bf16.gmra.mrb[0].mxu0 %v278
    %v441 = vpop.f32.mrb[0].mxu0
    %v442 = vadd.f32 0.0, %v441
    %v443 = vpop.f32.mrb[0].mxu0
    %v444 = vpop.f32.mrb[0].mxu0
    %v445 = vadd.f32 0.0, %v444
    %v446 = vpop.f32.mrb[0].mxu0
    %447 = vmatprep.mubr.bf16.mxu0 0
    %448 = vmatmul.mubr.bf16.gmra.mrb[0].mxu0 %v279
    %v449 = vpop.f32.mrb[0].mxu0
    %v450 = vadd.f32 0.0, %v449
    %v451 = vpop.f32.mrb[0].mxu0
    %v452 = vpop.f32.mrb[0].mxu0
    %v453 = vadd.f32 0.0, %v452
    %v454 = vpop.f32.mrb[0].mxu0
    %455 = vmatprep.mubr.bf16.mxu0 0
    %456 = vmatmul.mubr.bf16.gmra.mrb[0].mxu0 %v280
    %v457 = vpop.f32.mrb[0].mxu0
    %v458 = vadd.f32 0.0, %v457
    %v459 = vpop.f32.mrb[0].mxu0
    %v460 = vpop.f32.mrb[0].mxu0
    %v461 = vadd.f32 0.0, %v460
    %v462 = vpop.f32.mrb[0].mxu0
    %463 = vmatprep.mubr.bf16.mxu0 0
    %464 = vmatmul.mubr.bf16.gmra.mrb[0].mxu0 %v281
    %v465 = vpop.f32.mrb[0].mxu0
    %v466 = vadd.f32 0.0, %v465
    %v467 = vpop.f32.mrb[0].mxu0
    %v468 = vpop.f32.mrb[0].mxu0
    %v469 = vadd.f32 0.0, %v468
    %v470 = vpop.f32.mrb[0].mxu0
    %471 = vmatprep.mubr.bf16.mxu0 0
    %472 = vmatmul.mubr.bf16.gmra.mrb[0].mxu0 %v282
    %v473 = vpop.f32.mrb[0].mxu0
    %v474 = vadd.f32 0.0, %v473
    %v475 = vpop.f32.mrb[0].mxu0
    %v476 = vpop.f32.mrb[0].mxu0
    %v477 = vadd.f32 0.0, %v476
    %v478 = vpop.f32.mrb[0].mxu0
    %479 = vmatprep.mubr.bf16.mxu0 0
    %480 = vmatmul.mubr.bf16.gmra.mrb[0].mxu0 %v283
    %v481 = vpop.f32.mrb[0].mxu0
    %v482 = vadd.f32 0.0, %v481
    %v483 = vpop.f32.mrb[0].mxu0
    %v484 = vpop.f32.mrb[0].mxu0
    %v485 = vadd.f32 0.0, %v484
    %v486 = vpop.f32.mrb[0].mxu0
    %487 = vmatprep.mubr.bf16.mxu0 0
    %488 = vmatmul.mubr.bf16.gmra.mrb[0].mxu0 %v284
    %v489 = vpop.f32.mrb[0].mxu0
    %v490 = vadd.f32 0.0, %v489
    %v491 = vpop.f32.mrb[0].mxu0
    %v492 = vpop.f32.mrb[0].mxu0
    %v493 = vadd.f32 0.0, %v492
    %v494 = vpop.f32.mrb[0].mxu0
    %495 = vmatprep.mubr.bf16.mxu0 0
    %496 = vmatmul.mubr.bf16.gmra.mrb[0].mxu0 %v285
    %v497 = vpop.f32.mrb[0].mxu0
    %v498 = vadd.f32 0.0, %v497
    %v499 = vpop.f32.mrb[0].mxu0
    %v500 = vpop.f32.mrb[0].mxu0
    %v501 = vadd.f32 0.0, %v500
    %v502 = vpop.f32.mrb[0].mxu0
    %503 = vmatprep.mubr.bf16.mxu0 0
    %504 = vmatmul.mubr.bf16.gmra.mrb[0].mxu0 %v286
    %v505 = vpop.f32.mrb[0].mxu0
    %v506 = vadd.f32 0.0, %v505
    %v507 = vpop.f32.mrb[0].mxu0
    %v508 = vpop.f32.mrb[0].mxu0
    %v509 = vadd.f32 0.0, %v508
    %v510 = vpop.f32.mrb[0].mxu0
    %511 = vdwg.mxu0
    %512 = vst [vmem:[#allocation2] sm:$0xff] %v386
    %513 = vst [vmem:[#allocation2 + $0x8] sm:$0xff] %v389
    %514 = vst [vmem:[#allocation2 + $0x10] sm:$0xff] %v394
    %515 = vst [vmem:[#allocation2 + $0x18] sm:$0xff] %v397
    %516 = vst [vmem:[#allocation2 + $0x20] sm:$0xff] %v402
    %517 = vst [vmem:[#allocation2 + $0x28] sm:$0xff] %v405
    %518 = vst [vmem:[#allocation2 + $0x30] sm:$0xff] %v410
    %519 = vst [vmem:[#allocation2 + $0x38] sm:$0xff] %v413
    %520 = vst [vmem:[#allocation2 + $0x40] sm:$0xff] %v418
    %521 = vst [vmem:[#allocation2 + $0x48] sm:$0xff] %v421
    %522 = vst [vmem:[#allocation2 + $0x50] sm:$0xff] %v426
    %523 = vst [vmem:[#allocation2 + $0x58] sm:$0xff] %v429
    %524 = vst [vmem:[#allocation2 + $0x60] sm:$0xff] %v434
    %525 = vst [vmem:[#allocation2 + $0x68] sm:$0xff] %v437
    %526 = vst [vmem:[#allocation2 + $0x70] sm:$0xff] %v442
    %527 = vst [vmem:[#allocation2 + $0x78] sm:$0xff] %v445
    %528 = vst [vmem:[#allocation2 + $0x80] sm:$0xff] %v450
    %529 = vst [vmem:[#allocation2 + $0x88] sm:$0xff] %v453
    %530 = vst [vmem:[#allocation2 + $0x90] sm:$0xff] %v458
    %531 = vst [vmem:[#allocation2 + $0x98] sm:$0xff] %v461
    %532 = vst [vmem:[#allocation2 + $0xa0] sm:$0xff] %v466
    %533 = vst [vmem:[#allocation2 + $0xa8] sm:$0xff] %v469
    %534 = vst [vmem:[#allocation2 + $0xb0] sm:$0xff] %v474
    %535 = vst [vmem:[#allocation2 + $0xb8] sm:$0xff] %v477
    %536 = vst [vmem:[#allocation2 + $0xc0] sm:$0xff] %v482
    %537 = vst [vmem:[#allocation2 + $0xc8] sm:$0xff] %v485
    %538 = vst [vmem:[#allocation2 + $0xd0] sm:$0xff] %v490
    %539 = vst [vmem:[#allocation2 + $0xd8] sm:$0xff] %v493
    %540 = vst [vmem:[#allocation2 + $0xe0] sm:$0xff] %v498
    %541 = vst [vmem:[#allocation2 + $0xe8] sm:$0xff] %v501
    %542 = vst [vmem:[#allocation2 + $0xf0] sm:$0xff] %v506
    %543 = vst [vmem:[#allocation2 + $0xf8] sm:$0xff] %v509
    // Predicated region
    $region10: #{tpu_custom_call.1} parent=1 // pred_check
      _
    $region11: #{tpu_custom_call.1} parent=1 // pred_check_branch
      %545 = sbr.rel (0) target = $region13
    $region12: #{tpu_custom_call.1} parent=1 // pred_region
      %s547 = ssub.s32 4096, 4096
      %548 = vsyncadd [#allocation3], %s547
      %s549 = sshll.u32 [#allocation2], 4
      %s550 = int_to_ptr.vmem [resolvable:$true] %s549
      %555 = dma.vmem_to_hbm [thread:$0]  %s550, 4096, %s2, [#allocation3], 128, 128, 8
    $region13: #{tpu_custom_call.1} parent=1 // pred_fallthru
      _
    // Predicated region
    $region14: #{tpu_custom_call.1} parent=1 // pred_check
      _
    $region15: #{tpu_custom_call.1} parent=1 // pred_check_branch
      %557 = sbr.rel (0) target = $region17
    $region16: #{tpu_custom_call.1} parent=1 // pred_region
      %558 = dma.done [#allocation3], 4096
    $region17: #{tpu_custom_call.1} parent=1 // pred_fallthru
      _
    %559 = vsyncpa [#allocation3], 1

</llo_original>
